<compile_context>
chip_gen: v5e
topology: v5e:2x2
jax: 0.10.0
libtpu: 0.0.40
codegen_flags: <defaults>
</compile_context>

<pallas_src>
import jax
import jax.numpy as jnp
from jax.experimental import pallas as pl
from jax.experimental.pallas import tpu as pltpu


# Per-call double-buffered working-set target. We also pass an explicit
# vmem_limit_bytes derived from the actual block bytes, so this does not have
# to fit under any chip's *default* scoped-VMEM limit, only under physical
# VMEM (>= 64 MiB per TensorCore on all of v5e/v6e/v7x).
_VMEM_BUDGET_BYTES = 28 * 1024 * 1024
# If even the minimal (row_mult-row) tile's working set exceeds this, the
# feature dim is absurdly wide for this layer -> let XLA handle it.
_MAX_MIN_TILE_BYTES = 44 * 1024 * 1024
# Below this total size the kernel launch + forced HBM round trip are pure
# overhead vs. a plain (fusable) XLA concat.
_SMALL_BYTES = 2 * 1024 * 1024
# Hard cap for the explicit vmem limit (safe on v7x's 64 MiB physical VMEM).
_VMEM_LIMIT_CAP = 48 * 1024 * 1024


def _sublane_multiple(dtype) -> int:
    # rows per packed sublane group: 8 for 32-bit, 16 for bf16, 32 for 8-bit
    return max(8, 32 // jnp.dtype(dtype).itemsize)


def _fusion_kernel(ct_ref, clin_ref, out_ref):
    """Copy the two input tiles into their slots of the concatenated output tile.

    ct_ref:   [TB, D_ct]        (VMEM)
    clin_ref: [TB, D_clin]      (VMEM)
    out_ref:  [TB, D_ct+D_clin] (VMEM)
    """
    d_ct = ct_ref.shape[1]
    # Two wide contiguous stores (lane-dense & unmasked when d_ct % 128 == 0).
    out_ref[:, :d_ct] = ct_ref[...]
    out_ref[:, d_ct:] = clin_ref[...]


def _fusion_pallas(ct: jax.Array, clinical: jax.Array) -> jax.Array:
    b, d_ct = ct.shape
    _, d_clin = clinical.shape
    d_out = d_ct + d_clin
    itemsize = jnp.dtype(ct.dtype).itemsize

    row_mult = _sublane_multiple(ct.dtype)
    padded_b = pl.cdiv(b, row_mult) * row_mult

    # Double-buffered inputs + output live in VMEM simultaneously:
    #   2 * TB * (d_ct + d_clin + d_out) * itemsize  <=  budget
    bytes_per_row = 2 * (d_ct + d_clin + d_out) * itemsize

    # Largest batch tile that fits the budget, rounded down to the sublane
    # multiple, never larger than the (padded) batch.
    tb = (_VMEM_BUDGET_BYTES // bytes_per_row) // row_mult * row_mult
    tb = max(row_mult, tb)
    tb = min(tb, padded_b)

    # Keep at least 2 grid tiles whenever the batch allows, so the "parallel"
    # batch axis actually gives v7x's second TensorCore work to do.
    n_blocks = padded_b // row_mult
    if n_blocks >= 2:
        half = pl.cdiv(n_blocks, 2) * row_mult
        tb = min(tb, half)

    # Explicit scoped-VMEM limit derived from the real working set (+25% and
    # 2 MiB headroom for internal scratch / partial-tile padding), clamped to
    # stay well under physical VMEM on every generation.
    working_set = 2 * tb * (d_ct + d_clin + d_out) * itemsize
    vmem_limit = working_set + working_set // 4 + (2 << 20)
    vmem_limit = int(max(16 << 20, min(vmem_limit, _VMEM_LIMIT_CAP)))

    grid = (pl.cdiv(b, tb),)
    return pl.pallas_call(
        _fusion_kernel,
        out_shape=jax.ShapeDtypeStruct((b, d_out), ct.dtype),
        grid=grid,
        in_specs=[
            pl.BlockSpec((tb, d_ct), lambda i: (i, 0)),
            pl.BlockSpec((tb, d_clin), lambda i: (i, 0)),
        ],
        out_specs=pl.BlockSpec((tb, d_out), lambda i: (i, 0)),
        compiler_params=pltpu.CompilerParams(
            # Batch tiles are independent -> shard across both TCs on v7x.
            dimension_semantics=("parallel",),
            vmem_limit_bytes=vmem_limit,
        ),
    )(ct, clinical)


def fusion_layer(ct: jax.Array, clinical: jax.Array, *, force_kernel: bool = False) -> jax.Array:
    """Equivalent of Fusion_Layer.forward: concat along dim=1."""
    assert ct.ndim == 2 and clinical.ndim == 2
    assert ct.shape[0] == clinical.shape[0], "batch dims must match"

    # torch.cat semantics: promote mixed dtypes.
    out_dtype = jnp.promote_types(ct.dtype, clinical.dtype)
    ct = ct.astype(out_dtype)
    clinical = clinical.astype(out_dtype)

    b, d_ct = ct.shape
    d_clin = clinical.shape[1]
    d_out = d_ct + d_clin
    itemsize = jnp.dtype(out_dtype).itemsize
    total_bytes = (ct.size + clinical.size) * itemsize

    # Narrow feature dims (<128 lanes) force masked vst.msk partial stores in
    # the kernel — XLA's concat is strictly better there. Also bail out for
    # tiny totals and for pathologically wide features where even the minimal
    # 8-row tile would not fit the scoped-VMEM budget.
    row_mult = _sublane_multiple(out_dtype)
    min_tile_bytes = 2 * row_mult * (d_ct + d_clin + d_out) * itemsize
    narrow = d_ct < 128 or d_out < 128
    too_wide = min_tile_bytes > _MAX_MIN_TILE_BYTES

    if too_wide or (not force_kernel and (narrow or total_bytes < _SMALL_BYTES)):
        return jnp.concatenate([ct, clinical], axis=1)
    return _fusion_pallas(ct, clinical)


if __name__ == "__main__":
    key = jax.random.PRNGKey(0)
    k1, k2, k3, k4, k5, k6 = jax.random.split(key, 6)

    # 1) Demo-sized case (module's typical use: ct feature vector + a handful
    #    of clinical variables): fast fused XLA concat path.
    ct_small = jax.random.normal(k1, (2, 32), dtype=jnp.float32)
    clin_small = jax.random.normal(k2, (2, 8), dtype=jnp.float32)
    out_small = jax.block_until_ready(fusion_layer(ct_small, clin_small))
    ref_small = jnp.concatenate([ct_small, clin_small], axis=1)
    assert out_small.shape == (2, 40)
    assert jnp.array_equal(out_small, ref_small)

    # 2) Pallas kernel path: lane-aligned (multiple-of-128) feature dims,
    #    batch-tiled grid, unmasked full-vreg lane-dense stores.
    ct_big = jax.random.normal(k3, (64, 128), dtype=jnp.float32)
    clin_big = jax.random.normal(k4, (64, 128), dtype=jnp.float32)
    out_big = jax.block_until_ready(fusion_layer(ct_big, clin_big, force_kernel=True))
    ref_big = jnp.concatenate([ct_big, clin_big], axis=1)
    assert out_big.shape == (64, 256)
    assert jnp.array_equal(out_big, ref_big)

    # 3) Pallas kernel path with a non-128-aligned split point (masked-store
    #    correctness check; full-dim feature blocks keep the BlockSpec legal).
    ct_odd = jax.random.normal(k5, (24, 160), dtype=jnp.float32)
    clin_odd = jax.random.normal(k6, (24, 96), dtype=jnp.float32)
    out_odd = jax.block_until_ready(fusion_layer(ct_odd, clin_odd, force_kernel=True))
    ref_odd = jnp.concatenate([ct_odd, clin_odd], axis=1)
    assert out_odd.shape == (24, 256)
    assert jnp.array_equal(out_odd, ref_odd)

    # 4) Mixed-dtype promotion (torch.cat semantics).
    ct_bf16 = ct_small.astype(jnp.bfloat16)
    out_mixed = jax.block_until_ready(fusion_layer(ct_bf16, clin_small))
    ref_mixed = jnp.concatenate([ct_bf16.astype(jnp.float32), clin_small], axis=1)
    assert out_mixed.dtype == jnp.float32
    assert jnp.array_equal(out_mixed, ref_mixed)

    print("KERNEL_OK")
</pallas_src>

<mosaic_0001>
module attributes {stable_mosaic.version = 11 : i64} {
  func.func @_fusion_kernel(%arg0: i32, %arg1: memref<32x128xf32, #tpu.memory_space<vmem>>, %arg2: memref<32x128xf32, #tpu.memory_space<vmem>>, %arg3: memref<32x256xf32, #tpu.memory_space<vmem>>) attributes {dimension_semantics = [#tpu.dimension_semantics<parallel>], iteration_bounds = array<i64: 2>, scalar_prefetch = 0 : i64, scratch_operands = 0 : i64, tpu.core_type = #tpu.core_type<tc>, window_params = [{transform_indices = @transform_0, window_bounds = array<i64: 32, 128>}, {transform_indices = @transform_1, window_bounds = array<i64: 32, 128>}, {transform_indices = @transform_2, window_bounds = array<i64: 32, 256>}]} {
    %c0 = arith.constant 0 : index
    %c0_0 = arith.constant 0 : index
    %0 = vector.load %arg1[%c0, %c0_0] : memref<32x128xf32, #tpu.memory_space<vmem>>, vector<32x128xf32>
    %c0_1 = arith.constant 0 : index
    %c0_2 = arith.constant 0 : index
    %1 = vector.load %arg3[%c0_1, %c0_2] : memref<32x256xf32, #tpu.memory_space<vmem>>, vector<32x128xf32>
    tpu.vector_store %arg3[%c0_1, %c0_2], %0 {strides = array<i32>} : memref<32x256xf32, #tpu.memory_space<vmem>>, vector<32x128xf32>,
    %c0_3 = arith.constant 0 : index
    %c0_4 = arith.constant 0 : index
    %2 = vector.load %arg2[%c0_3, %c0_4] : memref<32x128xf32, #tpu.memory_space<vmem>>, vector<32x128xf32>
    %c0_5 = arith.constant 0 : index
    %c128 = arith.constant 128 : index
    %3 = vector.load %arg3[%c0_5, %c128] : memref<32x256xf32, #tpu.memory_space<vmem>>, vector<32x128xf32>
    tpu.vector_store %arg3[%c0_5, %c128], %2 {strides = array<i32>} : memref<32x256xf32, #tpu.memory_space<vmem>>, vector<32x128xf32>,
    return
  }
  func.func @transform_0(%arg0: i32) -> (i32, i32) {
    %c0_i32 = arith.constant 0 : i32
    %c0_i32_0 = arith.constant 0 : i32
    return %arg0, %c0_i32 : i32, i32
  }
  func.func @transform_1(%arg0: i32) -> (i32, i32) {
    %c0_i32 = arith.constant 0 : i32
    %c0_i32_0 = arith.constant 0 : i32
    return %arg0, %c0_i32 : i32, i32
  }
  func.func @transform_2(%arg0: i32) -> (i32, i32) {
    %c0_i32 = arith.constant 0 : i32
    %c0_i32_0 = arith.constant 0 : i32
    return %arg0, %c0_i32 : i32, i32
  }
}

</mosaic_0001>

<llo_original>
// kernel: tpu_custom_call.1
$region0: #{tpu_custom_call.1}
  #allocation0 [shape = 'u32[]', space=smem, size = 0x4, offset = 0x4, fixed_abs, tag = 'smem constant byte address 0x4 - core index']
  #allocation1 [shape = 'u32[72,128]{1,0:T(1,128)}', space=vmem, size = 0x9000, scoped, tag = 'internal scratch']
  %s0 = inlined_call_operand.hbm [shape: f32[64,128], index: 0, kind: input, shape index: {}]
  %s1 = inlined_call_operand.hbm [shape: f32[64,128], index: 1, kind: input, shape index: {}]
  %s2 = inlined_call_operand.hbm [shape: f32[64,256], index: 2, kind: output, shape index: {}]
  %s3 = sld [smem:[#allocation0]]
  $region49: #{tpu_custom_call.1} parent=0
    _
  %s5 = ssub.s32 1, %s3
  %s6 = scalar_select 0, %s5, %s3
  $region1: #{tpu_custom_call.1} parent=0
    #allocation2 [shape = 'u8[32768]{0}', space=vmem, size = 0x8000, scoped, tag = 'input window, operand 0']
    #allocation3 [shape = 's32[2]{0}', space=sflag, size = 0x8, scoped, tag = 'scoped memory for tpu_custom_call.1']
    #allocation4 [shape = 's32[2]{0}', space=sflag, size = 0x8, scoped, tag = 'scoped memory for tpu_custom_call.1']
    #allocation5 [shape = 'u8[32768]{0}', space=vmem, size = 0x8000, scoped, tag = 'input window, operand 1']
    #allocation6 [shape = 's32[2]{0}', space=sflag, size = 0x8, scoped, tag = 'scoped memory for tpu_custom_call.1']
    #allocation7 [shape = 'u8[65536]{0}', space=vmem, size = 0x10000, scoped, tag = 'output window, operand 0']
    %7 = vsyncpa [#allocation3], 0
    %s8 = scalar_lea.sflag [#allocation3], 1
    %9 = vsyncpa %s8, 0
    %10 = vsyncpa [#allocation6], 0
    %s11 = scalar_lea.sflag [#allocation6], 1
    %12 = vsyncpa %s11, 0
    %13 = vsyncpa [#allocation4], 0
    %s14 = scalar_lea.sflag [#allocation4], 1
    %15 = vsyncpa %s14, 0
    loop: start=0, step=1, limit=4
    $region2: #{tpu_custom_call.1} parent=1 // loop_pre_header
      _
    $region3: #{tpu_custom_call.1} parent=1 // loop_header
      %s17 = sphi 0, %s21
      %p18 = scmp.ge.s32.totalorder %s17, 4
      %s27 = sphi 0, %s29
      %s30 = sphi 0, %s27
      %s31 = sphi 0, %s30
      %s47 = sphi 0, %s31
      %s53 = sphi 0, %s55
      %s56 = sphi 0, %s53
      %s57 = sphi 0, %s56
      %s73 = sphi 0, %s57
      %s79 = sphi 0, %s81
      %s82 = sphi 0, %s79
      %s83 = sphi 0, %s82
      %s99 = sphi 0, %s83
    $region4: #{tpu_custom_call.1} parent=1 // loop_header_branch
      %20 = sbr.rel (%p18) target = $region8
    $region5: #{tpu_custom_call.1} parent=1 // loop_body
      %s22 = ssub.s32 %s17, 1
      %s23 = ssub.s32 %s17, 2
      %s24 = sadd.s32 %s17, 1
      %s25 = ssub.s32 %s17, %s24
      %p26 = scmp.eq.s32.totalorder %s25, 0
      %s28 = sadd.s32 %s27, 1
      %s29 = scalar_select %p26, %s27, %s28
      %p32 = pneg %p26
      %p33 = scmp.eq.s32.totalorder %s17, 1
      %p34 = por %p32, %p33
      %p35 = scmp.ne.s32.totalorder %s27, %s30
      %p36 = scmp.eq.s32.totalorder %s17, 0
      %p37 = por %p35, %p36
      %p38 = scmp.ne.s32.totalorder %s27, %s30
      %p39 = scmp.eq.s32.totalorder %s22, 1
      %p40 = por %p38, %p39
      %p41 = scmp.ne.s32.totalorder %s30, %s31
      %p42 = scmp.eq.s32.totalorder %s22, 0
      %p43 = por %p41, %p42
      %p44 = scmp.ne.s32.totalorder %s30, %s31
      %p45 = scmp.eq.s32.totalorder %s23, 1
      %p46 = por %p44, %p45
      %p48 = scmp.ne.s32.totalorder %s31, %s47
      %p49 = scmp.eq.s32.totalorder %s23, 0
      %p50 = por %p48, %p49
      %s51 = ssub.s32 %s17, %s24
      %p52 = scmp.eq.s32.totalorder %s51, 0
      %s54 = sadd.s32 %s53, 1
      %s55 = scalar_select %p52, %s53, %s54
      %p58 = pneg %p52
      %p59 = scmp.eq.s32.totalorder %s17, 1
      %p60 = por %p58, %p59
      %p61 = scmp.ne.s32.totalorder %s53, %s56
      %p62 = scmp.eq.s32.totalorder %s17, 0
      %p63 = por %p61, %p62
      %p64 = scmp.ne.s32.totalorder %s53, %s56
      %p65 = scmp.eq.s32.totalorder %s22, 1
      %p66 = por %p64, %p65
      %p67 = scmp.ne.s32.totalorder %s56, %s57
      %p68 = scmp.eq.s32.totalorder %s22, 0
      %p69 = por %p67, %p68
      %p70 = scmp.ne.s32.totalorder %s56, %s57
      %p71 = scmp.eq.s32.totalorder %s23, 1
      %p72 = por %p70, %p71
      %p74 = scmp.ne.s32.totalorder %s57, %s73
      %p75 = scmp.eq.s32.totalorder %s23, 0
      %p76 = por %p74, %p75
      %s77 = ssub.s32 %s17, %s24
      %p78 = scmp.eq.s32.totalorder %s77, 0
      %s80 = sadd.s32 %s79, 1
      %s81 = scalar_select %p78, %s79, %s80
      %p84 = pneg %p78
      %p85 = scmp.eq.s32.totalorder %s17, 1
      %p86 = por %p84, %p85
      %p87 = scmp.ne.s32.totalorder %s79, %s82
      %p88 = scmp.eq.s32.totalorder %s17, 0
      %p89 = por %p87, %p88
      %p90 = scmp.ne.s32.totalorder %s79, %s82
      %p91 = scmp.eq.s32.totalorder %s22, 1
      %p92 = por %p90, %p91
      %p93 = scmp.ne.s32.totalorder %s82, %s83
      %p94 = scmp.eq.s32.totalorder %s22, 0
      %p95 = por %p93, %p94
      %p96 = scmp.ne.s32.totalorder %s82, %s83
      %p97 = scmp.eq.s32.totalorder %s23, 1
      %p98 = por %p96, %p97
      %p100 = scmp.ne.s32.totalorder %s83, %s99
      %p101 = scmp.eq.s32.totalorder %s23, 0
      %p102 = por %p100, %p101
      %p103 = scmp.le.s32.totalorder 1, %s17
      %p104 = scmp.lt.s32.totalorder %s17, 3
      %p105 = pnand %p103, %p104
      %p106 = pneg %p105
      // Predicated region
      $region9: #{tpu_custom_call.1} parent=5 // pred_check
        _
      $region10: #{tpu_custom_call.1} parent=5 // pred_check_branch
        %108 = sbr.rel (%p105) target = $region12
      $region11: #{tpu_custom_call.1} parent=5 // pred_region
        %s109 = ssub.s32 %s17, 1
      $region12: #{tpu_custom_call.1} parent=5 // pred_fallthru
        _
      %p110 = scmp.lt.s32.totalorder %s17, 2
      // Predicated region
      $region13: #{tpu_custom_call.1} parent=5 // pred_check
        %p111 = pneg %p110
      $region14: #{tpu_custom_call.1} parent=5 // pred_check_branch
        %113 = sbr.rel (%p111) target = $region16
      $region15: #{tpu_custom_call.1} parent=5 // pred_region
        // Predicated region
        $region17: #{tpu_custom_call.1} parent=15 // pred_check
          %p114 = pneg %p37
        $region18: #{tpu_custom_call.1} parent=15 // pred_check_branch
          %116 = sbr.rel (%p114) target = $region20
        $region19: #{tpu_custom_call.1} parent=15 // pred_region
          %s117 = sand.u32 %s27, 1
          %s118 = scalar_lea.sflag [#allocation3], %s117
          %s119 = sand.u32 %s27, 1
          %s120 = smul.addr %s119, 32
          %s121 = scalar_lea.vmem [#allocation2], %s120
          %s122 = smul.u32 4, %s17
          %124 = vsyncadd %s118, 0
          %s125 = smul.addr %s122, 8
          %s126 = scalar_lea.hbm %s0, %s125
          %s127 = sshll.u32 %s126, 4
          %s128 = int_to_ptr.hbm [resolvable:$true] %s127
          %s129 = sshll.u32 %s121, 4
          %s130 = int_to_ptr.vmem [resolvable:$true] %s129
          %135 = dma.hbm_to_vmem [thread:$0]  %s128, 512, %s130, %s118, 128, 128, 8
        $region20: #{tpu_custom_call.1} parent=15 // pred_fallthru
          _
        // Predicated region
        $region21: #{tpu_custom_call.1} parent=15 // pred_check
          %p136 = pneg %p63
        $region22: #{tpu_custom_call.1} parent=15 // pred_check_branch
          %138 = sbr.rel (%p136) target = $region24
        $region23: #{tpu_custom_call.1} parent=15 // pred_region
          %s139 = sand.u32 %s53, 1
          %s140 = scalar_lea.sflag [#allocation6], %s139
          %s141 = sand.u32 %s53, 1
          %s142 = smul.addr %s141, 32
          %s143 = scalar_lea.vmem [#allocation5], %s142
          %s144 = smul.u32 4, %s17
          %146 = vsyncadd %s140, 0
          %s147 = smul.addr %s144, 8
          %s148 = scalar_lea.hbm %s1, %s147
          %s149 = sshll.u32 %s148, 4
          %s150 = int_to_ptr.hbm [resolvable:$true] %s149
          %s151 = sshll.u32 %s143, 4
          %s152 = int_to_ptr.vmem [resolvable:$true] %s151
          %157 = dma.hbm_to_vmem [thread:$0]  %s150, 512, %s152, %s140, 128, 128, 8
        $region24: #{tpu_custom_call.1} parent=15 // pred_fallthru
          _
      $region16: #{tpu_custom_call.1} parent=5 // pred_fallthru
        _
      %p158 = scmp.le.s32.totalorder 1, %s17
      %p159 = scmp.lt.s32.totalorder %s17, 3
      %p160 = pnand %p158, %p159
      %p161 = pneg %p160
      // Predicated region
      $region25: #{tpu_custom_call.1} parent=5 // pred_check
        _
      $region26: #{tpu_custom_call.1} parent=5 // pred_check_branch
        %163 = sbr.rel (%p160) target = $region28
      $region27: #{tpu_custom_call.1} parent=5 // pred_region
        %s164 = ssub.s32 %s17, 1
        %s165 = sand.u32 %s30, 1
        %s166 = scalar_lea.sflag [#allocation3], %s165
        %s167 = sand.u32 %s30, 1
        %s168 = smul.addr %s167, 32
        %s169 = scalar_lea.vmem [#allocation2], %s168
        // Predicated region
        $region29: #{tpu_custom_call.1} parent=27 // pred_check
          %p170 = pneg %p43
        $region30: #{tpu_custom_call.1} parent=27 // pred_check_branch
          %172 = sbr.rel (%p170) target = $region32
        $region31: #{tpu_custom_call.1} parent=27 // pred_region
          %174 = dma.done %s166, 512
        $region32: #{tpu_custom_call.1} parent=27 // pred_fallthru
          _
        %s175 = sand.u32 %s56, 1
        %s176 = scalar_lea.sflag [#allocation6], %s175
        %s177 = sand.u32 %s56, 1
        %s178 = smul.addr %s177, 32
        %s179 = scalar_lea.vmem [#allocation5], %s178
        // Predicated region
        $region33: #{tpu_custom_call.1} parent=27 // pred_check
          %p180 = pneg %p69
        $region34: #{tpu_custom_call.1} parent=27 // pred_check_branch
          %182 = sbr.rel (%p180) target = $region36
        $region35: #{tpu_custom_call.1} parent=27 // pred_region
          %184 = dma.done %s176, 512
        $region36: #{tpu_custom_call.1} parent=27 // pred_fallthru
          _
        %s185 = sand.u32 %s30, 1
        %s186 = scalar_lea.sflag [#allocation3], %s185
        %s187 = sand.u32 %s30, 1
        %s188 = smul.addr %s187, 32
        %s189 = scalar_lea.vmem [#allocation2], %s188
        %p190 = pneg %p43
        %p191 = pneg %p40
        %s192 = sand.u32 %s56, 1
        %s193 = scalar_lea.sflag [#allocation6], %s192
        %s194 = sand.u32 %s56, 1
        %s195 = smul.addr %s194, 32
        %s196 = scalar_lea.vmem [#allocation5], %s195
        %p197 = pneg %p69
        %p198 = pneg %p66
        %p199 = pneg %p95
        %p200 = pneg %p92
        %s201 = sand.u32 %s82, 1
        %s202 = scalar_lea.sflag [#allocation4], %s201
        %s203 = sand.u32 %s82, 1
        %s204 = smul.addr %s203, 64
        %s205 = scalar_lea.vmem [#allocation7], %s204
        %s206 = smul.u32 4, %s22
        %s207 = smul.u32 4, %s22
        %s208 = smul.u32 4, %s22
        %v209 = vld [vmem:[%s169] sm:$0xff]
        %v210 = vld [vmem:[%s169 + $0x8] sm:$0xff]
        %v211 = vld [vmem:[%s169 + $0x10] sm:$0xff]
        %v212 = vld [vmem:[%s169 + $0x18] sm:$0xff]
        %213 = vst [vmem:[%s205] sm:$0xff] %v209
        %214 = vst [vmem:[%s205 + $0x10] sm:$0xff] %v210
        %215 = vst [vmem:[%s205 + $0x20] sm:$0xff] %v211
        %216 = vst [vmem:[%s205 + $0x30] sm:$0xff] %v212
        %v217 = vld [vmem:[%s179] sm:$0xff]
        %v218 = vld [vmem:[%s179 + $0x8] sm:$0xff]
        %v219 = vld [vmem:[%s179 + $0x10] sm:$0xff]
        %v220 = vld [vmem:[%s179 + $0x18] sm:$0xff]
        %221 = vst [vmem:[%s205 + $0x8] sm:$0xff] %v217
        %222 = vst [vmem:[%s205 + $0x18] sm:$0xff] %v218
        %223 = vst [vmem:[%s205 + $0x28] sm:$0xff] %v219
        %224 = vst [vmem:[%s205 + $0x38] sm:$0xff] %v220
        %s225 = sand.u32 %s82, 1
        %s226 = scalar_lea.sflag [#allocation4], %s225
        %s227 = sand.u32 %s82, 1
        %s228 = smul.addr %s227, 64
        %s229 = scalar_lea.vmem [#allocation7], %s228
        // Predicated region
        $region37: #{tpu_custom_call.1} parent=27 // pred_check
          %p230 = pneg %p92
        $region38: #{tpu_custom_call.1} parent=27 // pred_check_branch
          %232 = sbr.rel (%p230) target = $region40
        $region39: #{tpu_custom_call.1} parent=27 // pred_region
          %s233 = smul.u32 4, %s22
          %235 = vsyncadd %s226, 0
          %s236 = smul.addr %s233, 2
          %s237 = smul.addr %s236, 8
          %s238 = scalar_lea.hbm %s2, %s237
          %s239 = sshll.u32 %s229, 4
          %s240 = int_to_ptr.vmem [resolvable:$true] %s239
          %s241 = sshll.u32 %s238, 4
          %s242 = int_to_ptr.hbm [resolvable:$true] %s241
          %247 = dma.vmem_to_hbm [thread:$0]  %s240, 1024, %s242, %s226, 256, 256, 16
        $region40: #{tpu_custom_call.1} parent=27 // pred_fallthru
          _
      $region28: #{tpu_custom_call.1} parent=5 // pred_fallthru
        _
      %p248 = scmp.le.s32.totalorder 2, %s17
      // Predicated region
      $region41: #{tpu_custom_call.1} parent=5 // pred_check
        %p249 = pneg %p248
      $region42: #{tpu_custom_call.1} parent=5 // pred_check_branch
        %251 = sbr.rel (%p249) target = $region44
      $region43: #{tpu_custom_call.1} parent=5 // pred_region
        %s252 = ssub.s32 %s17, 2
        // Predicated region
        $region45: #{tpu_custom_call.1} parent=43 // pred_check
          %p253 = pneg %p98
        $region46: #{tpu_custom_call.1} parent=43 // pred_check_branch
          %255 = sbr.rel (%p253) target = $region48
        $region47: #{tpu_custom_call.1} parent=43 // pred_region
          %s256 = sand.u32 %s83, 1
          %s257 = scalar_lea.sflag [#allocation4], %s256
          %s258 = sand.u32 %s83, 1
          %s259 = smul.addr %s258, 64
          %s260 = scalar_lea.vmem [#allocation7], %s259
          %262 = dma.done %s257, 1024
        $region48: #{tpu_custom_call.1} parent=43 // pred_fallthru
          _
      $region44: #{tpu_custom_call.1} parent=5 // pred_fallthru
        _
    $region6: #{tpu_custom_call.1} parent=1 // loop_footer
      %s21 = sadd.s32 1, %s17
    $region7: #{tpu_custom_call.1} parent=1 // loop_footer_branch
      %16 = sbr.rel target = $region3
    $region8: #{tpu_custom_call.1} parent=1 // loop_exit
      _
    %263 = vsyncpa [#allocation3], 1
    %s264 = scalar_lea.sflag [#allocation3], 1
    %265 = vsyncpa %s264, 1
    %266 = vsyncpa [#allocation6], 1
    %s267 = scalar_lea.sflag [#allocation6], 1
    %268 = vsyncpa %s267, 1
    %269 = vsyncpa [#allocation4], 1
    %s270 = scalar_lea.sflag [#allocation4], 1
    %271 = vsyncpa %s270, 1

</llo_original>
